<compile_context>
chip_gen: v7x
topology: tpu7x:2x2x1
jax: 0.10.0
libtpu: 0.0.40
codegen_flags: <defaults>
</compile_context>

<pallas_src>
import functools

import jax
import jax.numpy as jnp
from jax.experimental import pallas as pl
from jax.experimental.pallas import tpu as pltpu


def _round_up(x, m):
    return ((x + m - 1) // m) * m


def _vmem_capacity_bytes():
    try:
        return int(pltpu.get_tpu_info().vmem_capacity_bytes)
    except Exception:
        return 64 * 1024 * 1024  # conservative default (v7x per-TC VMEM)


# ---------------------------------------------------------------------------
# Kernels
# ---------------------------------------------------------------------------

def _rgcn_ah_kernel(a_ref, h_ref, w_ref, o_ref, acc_ah_ref, *,
                    tile_src, h_resident):
    """out_d += sum_r (A[r, d, :] @ H) @ W[r]   (F_in <= F_out association).

    a_ref : (tile_dst, tile_src)  bf16/f32  (relation dim squeezed)
    h_ref : (n_src_p, f_in_p) when resident, else (tile_src, f_in_p)
    w_ref : (f_in_p, f_out_p) fp32           (relation dim squeezed)
    o_ref : (tile_dst, f_out_p) fp32 accumulator, resident across (r, s)
    """
    r = pl.program_id(1)
    s = pl.program_id(2)

    @pl.when((r == 0) & (s == 0))
    def _():
        o_ref[...] = jnp.zeros_like(o_ref)

    @pl.when(s == 0)
    def _():
        acc_ah_ref[...] = jnp.zeros_like(acc_ah_ref)

    if h_resident:
        start = pl.multiple_of(s * tile_src, tile_src)
        h_tile = h_ref[pl.ds(start, tile_src), :]
    else:
        h_tile = h_ref[...]

    # (tile_dst, tile_src) @ (tile_src, f_in_p) on the MXU, fp32 accumulate.
    acc_ah_ref[...] += jnp.dot(a_ref[...], h_tile,
                               preferred_element_type=jnp.float32)

    @pl.when(s == pl.num_programs(2) - 1)
    def _():
        # Tiny per-relation transform, kept fully in fp32 so the
        # degree-weighted A@H intermediate is never truncated to bf16.
        o_ref[...] += jnp.dot(acc_ah_ref[...], w_ref[...],
                              preferred_element_type=jnp.float32)


def _rgcn_hw_kernel(a_ref, hw_ref, o_ref, *, tile_src, n_src_p, hw_resident):
    """out_d += sum_r A[r, d, :] @ (H @ W[r])   (F_in > F_out association).

    hw_ref : (R * n_src_p, f_out_p) flat slab when resident,
             else (tile_src, f_out_p) (relation dim squeezed).
    """
    r = pl.program_id(1)
    s = pl.program_id(2)

    @pl.when((r == 0) & (s == 0))
    def _():
        o_ref[...] = jnp.zeros_like(o_ref)

    if hw_resident:
        start = pl.multiple_of(r * n_src_p + s * tile_src, tile_src)
        hw_tile = hw_ref[pl.ds(start, tile_src), :]
    else:
        hw_tile = hw_ref[...]

    o_ref[...] += jnp.dot(a_ref[...], hw_tile,
                          preferred_element_type=jnp.float32)


# ---------------------------------------------------------------------------
# Wrapper
# ---------------------------------------------------------------------------

def rgcn_forward(h, weight, src, dst, rel, *, tile_dst=None, tile_src=None,
                 use_bf16=True):
    """RGCN forward.

    h: (N, F_in) node features, weight: (R, F_in, F_out),
    src/dst/rel: (E,) int edge lists.  Returns (N, F_out) in h.dtype.
    """
    N, F_in = h.shape
    R, _, F_out = weight.shape
    out_dtype = h.dtype
    cdtype = jnp.bfloat16 if use_bf16 else jnp.float32
    c_item = jnp.dtype(cdtype).itemsize

    # ----- generation-aware VMEM / tile selection ---------------------------
    vmem_cap = _vmem_capacity_bytes()
    big_vmem = vmem_cap >= 100 * 1024 * 1024            # v5e / v6e (128 MiB)
    vmem_limit = min(vmem_cap - 8 * 1024 * 1024, 100 * 1024 * 1024)

    f_in_p = _round_up(F_in, 128)
    f_out_p = _round_up(F_out, 128)
    n128 = _round_up(N, 128)

    td = tile_dst if tile_dst is not None else (2048 if big_vmem else 1024)
    ts = tile_src if tile_src is not None else 1024
    td = min(_round_up(td, 128), n128)
    ts = min(_round_up(ts, 128), n128)
    # At least 2 dst tiles when possible so the "parallel" dst axis really
    # shards across v7x's two TensorCores (harmless on single-TC chips).
    while _round_up(N, td) // td < 2 and td >= 256:
        td //= 2

    ah_path = F_in <= F_out

    def streamed_budget(td_, ts_):
        a = 2 * td_ * ts_ * c_item                       # A double-buffered
        out = 2 * td_ * f_out_p * 4                      # fp32 output block
        if ah_path:
            return (a + out + 2 * ts_ * f_in_p * c_item  # streamed H
                    + 2 * f_in_p * f_out_p * 4           # fp32 W_r
                    + td_ * f_in_p * 4)                  # acc_ah scratch
        return a + out + 2 * ts_ * f_out_p * c_item      # streamed HW tile

    # Shrink tiles if even the streamed configuration would not fit.
    while streamed_budget(td, ts) > 0.9 * vmem_limit and max(td, ts) > 128:
        if td >= ts:
            td //= 2
        else:
            ts //= 2

    n_dst_p = _round_up(N, td)
    n_src_p = _round_up(N, ts)
    n_dst_tiles = n_dst_p // td
    n_src_tiles = n_src_p // ts

    # Residency of H / H@W (DMA once, slice in-kernel) iff it fits VMEM.
    if ah_path:
        resident_extra = 2 * (n_src_p - ts) * f_in_p * c_item
    else:
        resident_extra = 2 * (R * n_src_p - ts) * f_out_p * c_item
    resident = (streamed_budget(td, ts) + resident_extra) <= 0.9 * vmem_limit

    # ----- adjacency built directly padded, in the compute dtype ------------
    # NOTE: bf16 edge multiplicities are exact only up to 256 parallel edges
    # per (relation, dst, src); pass use_bf16=False for heavier multigraphs.
    adj = jnp.zeros((R, n_dst_p, n_src_p), dtype=cdtype)
    adj = adj.at[rel, dst, src].add(jnp.ones(src.shape, cdtype))

    grid = (n_dst_tiles, R, n_src_tiles)
    cparams = pltpu.CompilerParams(
        dimension_semantics=("parallel", "arbitrary", "arbitrary"),
        vmem_limit_bytes=int(vmem_limit),
    )
    a_spec = pl.BlockSpec((None, td, ts), lambda d, r, s: (r, d, s))
    out_spec = pl.BlockSpec((td, f_out_p), lambda d, r, s: (d, 0))
    out_shape = jax.ShapeDtypeStruct((n_dst_p, f_out_p), jnp.float32)
    a_bytes = adj.size * c_item
    out_bytes = n_dst_p * f_out_p * 4

    if ah_path:
        # (A_r @ H) @ W_r : N^2-sized contraction runs over the narrower F_in.
        h_p = jnp.pad(h, ((0, n_src_p - N), (0, f_in_p - F_in))).astype(cdtype)
        w_p = jnp.pad(weight, ((0, 0), (0, f_in_p - F_in),
                               (0, f_out_p - F_out))).astype(jnp.float32)
        if resident:
            h_spec = pl.BlockSpec((n_src_p, f_in_p), lambda d, r, s: (0, 0))
            h_traffic = h_p.size * c_item
        else:
            h_spec = pl.BlockSpec((ts, f_in_p), lambda d, r, s: (s, 0))
            h_traffic = n_dst_tiles * R * h_p.size * c_item
        kernel = functools.partial(_rgcn_ah_kernel, tile_src=ts,
                                   h_resident=resident)
        flops = (2 * R * n_dst_p * n_src_p * f_in_p
                 + 2 * R * n_dst_p * f_in_p * f_out_p)
        bytes_accessed = (a_bytes + h_traffic + out_bytes
                          + n_dst_tiles * R * f_in_p * f_out_p * 4)
        out_p = pl.pallas_call(
            kernel,
            out_shape=out_shape,
            grid_spec=pltpu.PrefetchScalarGridSpec(
                num_scalar_prefetch=0,
                grid=grid,
                in_specs=[a_spec, h_spec,
                          pl.BlockSpec((None, f_in_p, f_out_p),
                                       lambda d, r, s: (r, 0, 0))],
                out_specs=out_spec,
                scratch_shapes=[pltpu.VMEM((td, f_in_p), jnp.float32)],
            ),
            compiler_params=cparams,
            cost_estimate=pl.CostEstimate(flops=int(flops), transcendentals=0,
                                          bytes_accessed=int(bytes_accessed)),
        )(adj, h_p, w_p)
    else:
        # A_r @ (H @ W_r) : hoist the per-relation transform; bf16 MXU inputs,
        # fp32 accumulation (review item: don't run this pre-pass in fp32).
        h_pad = jnp.pad(h, ((0, n_src_p - N), (0, 0))).astype(cdtype)
        hw = jnp.einsum("nf,rfo->rno", h_pad, weight.astype(cdtype),
                        preferred_element_type=jnp.float32)
        hw_p = jnp.pad(hw, ((0, 0), (0, 0),
                            (0, f_out_p - F_out))).astype(cdtype)
        if resident:
            hw_arr = hw_p.reshape(R * n_src_p, f_out_p)
            hw_spec = pl.BlockSpec((R * n_src_p, f_out_p),
                                   lambda d, r, s: (0, 0))
            hw_traffic = hw_arr.size * c_item
        else:
            hw_arr = hw_p
            hw_spec = pl.BlockSpec((None, ts, f_out_p),
                                   lambda d, r, s: (r, s, 0))
            hw_traffic = n_dst_tiles * hw_p.size * c_item
        kernel = functools.partial(_rgcn_hw_kernel, tile_src=ts,
                                   n_src_p=n_src_p, hw_resident=resident)
        flops = 2 * R * n_dst_p * n_src_p * f_out_p
        bytes_accessed = a_bytes + hw_traffic + out_bytes
        out_p = pl.pallas_call(
            kernel,
            out_shape=out_shape,
            grid_spec=pltpu.PrefetchScalarGridSpec(
                num_scalar_prefetch=0,
                grid=grid,
                in_specs=[a_spec, hw_spec],
                out_specs=out_spec,
            ),
            compiler_params=cparams,
            cost_estimate=pl.CostEstimate(flops=int(flops), transcendentals=0,
                                          bytes_accessed=int(bytes_accessed)),
        )(adj, hw_arr)

    return out_p[:N, :F_out].astype(out_dtype)


def xavier_uniform_relu(key, num_rel, in_feat, out_feat):
    # Matches nn.init.xavier_uniform_ with gain=calculate_gain('relu') on a
    # (num_rel, in_feat, out_feat) tensor: fan_in = in_feat*out_feat,
    # fan_out = num_rel*out_feat.
    gain = jnp.sqrt(2.0)
    fan_in = in_feat * out_feat
    fan_out = num_rel * out_feat
    bound = gain * jnp.sqrt(6.0 / (fan_in + fan_out))
    return jax.random.uniform(key, (num_rel, in_feat, out_feat), jnp.float32,
                              -bound, bound)


if __name__ == "__main__":
    fwd = jax.jit(rgcn_forward,
                  static_argnames=("tile_dst", "tile_src", "use_bf16"))

    def run_case(key, num_nodes, in_feat, out_feat, num_rel, num_edges,
                 **tiles):
        k_w, k_h, k_src, k_dst, k_rel = jax.random.split(key, 5)
        weight = xavier_uniform_relu(k_w, num_rel, in_feat, out_feat)
        h = jax.random.normal(k_h, (num_nodes, in_feat), jnp.float32)
        src = jax.random.randint(k_src, (num_edges,), 0, num_nodes)
        dst = jax.random.randint(k_dst, (num_edges,), 0, num_nodes)
        rel = jax.random.randint(k_rel, (num_edges,), 0, num_rel)

        out = jax.block_until_ready(fwd(h, weight, src, dst, rel, **tiles))

        # Pure-JAX reference: per-edge bmm + scatter-sum over destinations.
        msg = jnp.einsum("ef,efo->eo", h[src], weight[rel])
        ref = jnp.zeros((num_nodes, out_feat), jnp.float32).at[dst].add(msg)

        assert out.shape == (num_nodes, out_feat)
        err = float(jnp.max(jnp.abs(out.astype(jnp.float32) - ref)))
        assert jnp.allclose(out, ref, atol=5e-2, rtol=5e-2), \
            f"mismatch vs reference (max abs err {err})"

    key = jax.random.PRNGKey(0)
    k1, k2, k3, k4 = jax.random.split(key, 4)
    # F_in < F_out: (A @ H) @ W kernel, single dst tile.
    run_case(k1, num_nodes=16, in_feat=32, out_feat=64, num_rel=4,
             num_edges=48)
    # F_in > F_out: A @ (H @ W) kernel with hoisted bf16 HW, single dst tile.
    run_case(k2, num_nodes=16, in_feat=64, out_feat=32, num_rel=4,
             num_edges=48)
    # Multi-tile AH path: exercises resident-H in-kernel pl.ds slicing.
    run_case(k3, num_nodes=300, in_feat=32, out_feat=64, num_rel=3,
             num_edges=900, tile_dst=128, tile_src=128)
    # Multi-tile HW path: exercises resident flat-HW slicing across relations.
    run_case(k4, num_nodes=300, in_feat=64, out_feat=32, num_rel=3,
             num_edges=900, tile_dst=128, tile_src=128)

    print("KERNEL_OK")
</pallas_src>

<mosaic_0001>
module attributes {stable_mosaic.version = 11 : i64} {
  func.func @_rgcn_ah_kernel(%arg0: i32, %arg1: i32, %arg2: i32, %arg3: memref<1x128x128xbf16, #tpu.memory_space<vmem>>, %arg4: memref<128x128xbf16, #tpu.memory_space<vmem>>, %arg5: memref<1x128x128xf32, #tpu.memory_space<vmem>>, %arg6: memref<128x128xf32, #tpu.memory_space<vmem>>, %arg7: memref<128x128xf32, #tpu.memory_space<vmem>>) attributes {dimension_semantics = [#tpu.dimension_semantics<parallel>, #tpu.dimension_semantics<arbitrary>, #tpu.dimension_semantics<arbitrary>], iteration_bounds = array<i64: 1, 4, 1>, scalar_prefetch = 0 : i64, scratch_operands = 1 : i64, tpu.core_type = #tpu.core_type<tc>, window_params = [{transform_indices = @transform_0, window_bounds = array<i64: 1, 128, 128>}, {pipeline_mode = #tpu.pipeline_mode<synchronous>, transform_indices = @transform_1, window_bounds = array<i64: 128, 128>}, {transform_indices = @transform_2, window_bounds = array<i64: 1, 128, 128>}, {transform_indices = @transform_3, window_bounds = array<i64: 128, 128>}]} {
    %c0_i32 = arith.constant 0 : i32
    %0 = arith.cmpi eq, %arg1, %c0_i32 : i32
    %c0_i32_0 = arith.constant 0 : i32
    %1 = arith.cmpi eq, %arg2, %c0_i32_0 : i32
    %2 = arith.andi %0, %1 : i1
    %3 = arith.extui %2 : i1 to i32
    %c0_i32_1 = arith.constant 0 : i32
    %4 = arith.cmpi ne, %3, %c0_i32_1 : i32
    scf.if %4 {
      %cst_13 = arith.constant 0.000000e+00 : f32
      %21 = vector.broadcast %cst_13 : f32 to vector<128x128xf32>
      %c0_14 = arith.constant 0 : index
      %c0_15 = arith.constant 0 : index
      %22 = vector.load %arg6[%c0_14, %c0_15] : memref<128x128xf32, #tpu.memory_space<vmem>>, vector<128x128xf32>
      tpu.vector_store %arg6[%c0_14, %c0_15], %21 {strides = array<i32>} : memref<128x128xf32, #tpu.memory_space<vmem>>, vector<128x128xf32>,
    } else {
    }
    %c0_i32_2 = arith.constant 0 : i32
    %5 = arith.cmpi eq, %arg2, %c0_i32_2 : i32
    %6 = arith.extui %5 : i1 to i32
    %c0_i32_3 = arith.constant 0 : i32
    %7 = arith.cmpi ne, %6, %c0_i32_3 : i32
    scf.if %7 {
      %cst_13 = arith.constant 0.000000e+00 : f32
      %21 = vector.broadcast %cst_13 : f32 to vector<128x128xf32>
      %c0_14 = arith.constant 0 : index
      %c0_15 = arith.constant 0 : index
      %22 = vector.load %arg7[%c0_14, %c0_15] : memref<128x128xf32, #tpu.memory_space<vmem>>, vector<128x128xf32>
      tpu.vector_store %arg7[%c0_14, %c0_15], %21 {strides = array<i32>} : memref<128x128xf32, #tpu.memory_space<vmem>>, vector<128x128xf32>,
    } else {
    }
    %c128_i32 = arith.constant 128 : i32
    %8 = arith.muli %arg2, %c128_i32 : i32
    %9 = tpu.assume_multiple %8, 128 : i32
    %10 = arith.index_cast %9 : i32 to index
    %c0 = arith.constant 0 : index
    %11 = vector.load %arg4[%10, %c0] : memref<128x128xbf16, #tpu.memory_space<vmem>>, vector<128x128xbf16>
    %c0_4 = arith.constant 0 : index
    %c0_5 = arith.constant 0 : index
    %12 = vector.load %arg7[%c0_4, %c0_5] : memref<128x128xf32, #tpu.memory_space<vmem>>, vector<128x128xf32>
    %c0_6 = arith.constant 0 : index
    %c0_7 = arith.constant 0 : index
    %c0_8 = arith.constant 0 : index
    %13 = vector.load %arg3[%c0_6, %c0_7, %c0_8] : memref<1x128x128xbf16, #tpu.memory_space<vmem>>, vector<1x128x128xbf16>
    %14 = vector.shape_cast %13 : vector<1x128x128xbf16> to vector<128x128xbf16>
    %cst = arith.constant dense<0.000000e+00> : vector<128x128xf32>
    %15 = tpu.matmul %14, %11, %cst {dimension_numbers = #tpu.dot_dimension_numbers<[1], [0], [0], [1], [0, 0, 1, 1], [], []>} : vector<128x128xbf16>, vector<128x128xbf16>, vector<128x128xf32> -> vector<128x128xf32>
    %16 = arith.addf %12, %15 : vector<128x128xf32>
    %c0_9 = arith.constant 0 : index
    %c0_10 = arith.constant 0 : index
    %17 = vector.load %arg7[%c0_9, %c0_10] : memref<128x128xf32, #tpu.memory_space<vmem>>, vector<128x128xf32>
    tpu.vector_store %arg7[%c0_9, %c0_10], %16 {strides = array<i32>} : memref<128x128xf32, #tpu.memory_space<vmem>>, vector<128x128xf32>,
    %c0_i32_11 = arith.constant 0 : i32
    %18 = arith.cmpi eq, %arg2, %c0_i32_11 : i32
    %19 = arith.extui %18 : i1 to i32
    %c0_i32_12 = arith.constant 0 : i32
    %20 = arith.cmpi ne, %19, %c0_i32_12 : i32
    scf.if %20 {
      %c0_13 = arith.constant 0 : index
      %c0_14 = arith.constant 0 : index
      %21 = vector.load %arg6[%c0_13, %c0_14] : memref<128x128xf32, #tpu.memory_space<vmem>>, vector<128x128xf32>
      %c0_15 = arith.constant 0 : index
      %c0_16 = arith.constant 0 : index
      %22 = vector.load %arg7[%c0_15, %c0_16] : memref<128x128xf32, #tpu.memory_space<vmem>>, vector<128x128xf32>
      %c0_17 = arith.constant 0 : index
      %c0_18 = arith.constant 0 : index
      %c0_19 = arith.constant 0 : index
      %23 = vector.load %arg5[%c0_17, %c0_18, %c0_19] : memref<1x128x128xf32, #tpu.memory_space<vmem>>, vector<1x128x128xf32>
      %24 = vector.shape_cast %23 : vector<1x128x128xf32> to vector<128x128xf32>
      %cst_20 = arith.constant dense<0.000000e+00> : vector<128x128xf32>
      %25 = tpu.matmul %22, %24, %cst_20 {dimension_numbers = #tpu.dot_dimension_numbers<[1], [0], [0], [1], [0, 0, 1, 1], [], []>} : vector<128x128xf32>, vector<128x128xf32>, vector<128x128xf32> -> vector<128x128xf32>
      %26 = arith.addf %21, %25 : vector<128x128xf32>
      %c0_21 = arith.constant 0 : index
      %c0_22 = arith.constant 0 : index
      %27 = vector.load %arg6[%c0_21, %c0_22] : memref<128x128xf32, #tpu.memory_space<vmem>>, vector<128x128xf32>
      tpu.vector_store %arg6[%c0_21, %c0_22], %26 {strides = array<i32>} : memref<128x128xf32, #tpu.memory_space<vmem>>, vector<128x128xf32>,
    } else {
    }
    return
  }
  func.func @transform_0(%arg0: i32, %arg1: i32, %arg2: i32) -> (i32, i32, i32) {
    %c0_i32 = arith.constant 0 : i32
    return %arg1, %arg0, %arg2 : i32, i32, i32
  }
  func.func @transform_1(%arg0: i32, %arg1: i32, %arg2: i32) -> (i32, i32) {
    %c0_i32 = arith.constant 0 : i32
    %c0_i32_0 = arith.constant 0 : i32
    %c0_i32_1 = arith.constant 0 : i32
    return %c0_i32, %c0_i32_0 : i32, i32
  }
  func.func @transform_2(%arg0: i32, %arg1: i32, %arg2: i32) -> (i32, i32, i32) {
    %c0_i32 = arith.constant 0 : i32
    %c0_i32_0 = arith.constant 0 : i32
    %c0_i32_1 = arith.constant 0 : i32
    return %arg1, %c0_i32, %c0_i32_0 : i32, i32, i32
  }
  func.func @transform_3(%arg0: i32, %arg1: i32, %arg2: i32) -> (i32, i32) {
    %c0_i32 = arith.constant 0 : i32
    %c0_i32_0 = arith.constant 0 : i32
    return %arg0, %c0_i32 : i32, i32
  }
}

</mosaic_0001>

<llo_original>
// kernel: rgcn_forward.1
$region0: #{rgcn_forward.1}
  #allocation0 [shape = 'u32[]', space=smem, size = 0x4, offset = 0x4, fixed_abs, tag = 'smem constant byte address 0x4 - core index']
  #allocation1 [shape = 'u32[144,128]{1,0:T(1,128)}', space=vmem, size = 0x12000, scoped, tag = 'internal scratch']
  #allocation2 [shape = 'f32[128,128]{1,0:T(8,128)}', space=vmem, size = 0x10000, scoped, tag = 'scratch operand']
  %s0 = inlined_call_operand.vmem [shape: bf16[4,128,128], index: 0, kind: input, shape index: {}]
  %s1 = inlined_call_operand.vmem [shape: bf16[128,128], index: 1, kind: input, shape index: {}]
  %s2 = inlined_call_operand.vmem [shape: f32[4,128,128], index: 2, kind: input, shape index: {}]
  %s3 = inlined_call_operand.vmem [shape: f32[128,128], index: 3, kind: output, shape index: {}]
  %s4 = sld [smem:[#allocation0]]
  $region57: #{rgcn_forward.1} parent=0
    _
  %s6 = ssub.s32 1, %s4
  %s7 = scalar_select 0, %s6, %s4
  loop: start=0, step=1, limit=6
  $region2: #{rgcn_forward.1} parent=0 // loop_pre_header
    _
  $region3: #{rgcn_forward.1} parent=0 // loop_header
    %s9 = sphi 0, %s13
    %p10 = scmp.ge.s32.totalorder %s9, 6
    %s16 = sphi 0, %s35
    %s17 = sphi 0, %s31
    %s18 = sphi 0, %s27
    %s19 = sphi 0, %s16
    %s20 = sphi 0, %s17
    %s21 = sphi 0, %s18
    %s22 = sphi 0, %s19
    %s23 = sphi 0, %s20
    %s24 = sphi 0, %s21
    %s42 = sphi 0, %s44
    %s45 = sphi 0, %s42
    %s46 = sphi 0, %s45
    %s62 = sphi 0, %s46
    %s66 = sphi 0, %s66
    %s68 = sphi 0, %s66
    %s69 = sphi 0, %s68
    %s83 = sphi 0, %s69
    %s89 = sphi 0, %s91
    %s92 = sphi 0, %s89
    %s93 = sphi 0, %s92
    %s109 = sphi 0, %s93
    %s115 = sphi 0, %s117
    %s118 = sphi 0, %s115
    %s119 = sphi 0, %s118
    %s135 = sphi 0, %s119
  $region4: #{rgcn_forward.1} parent=0 // loop_header_branch
    %12 = sbr.rel (%p10) target = $region8
  $region5: #{rgcn_forward.1} parent=0 // loop_body
    %s14 = ssub.s32 %s9, 1
    %s15 = ssub.s32 %s9, 2
    %s25 = sadd.s32 1, %s18
    %p26 = scmp.ge.s32.totalorder %s25, 1
    %s27 = scalar_select %p26, 0, %s25
    %s28 = sadd.s32 1, %s17
    %s29 = scalar_select %p26, %s28, %s17
    %p30 = scmp.ge.s32.totalorder %s29, 4
    %s31 = scalar_select %p30, 0, %s29
    %s32 = sadd.s32 1, %s16
    %s33 = scalar_select %p30, %s32, %s16
    %p34 = scmp.ge.s32.totalorder %s33, 1
    %s35 = scalar_select %p34, 0, %s33
    %s36 = ssub.s32 %s17, %s31
    %s37 = ssub.s32 %s16, %s35
    %s38 = sor.u32 %s36, %s37
    %s39 = ssub.s32 %s18, %s27
    %s40 = sor.u32 %s38, %s39
    %p41 = scmp.eq.s32.totalorder %s40, 0
    %s43 = sadd.s32 %s42, 1
    %s44 = scalar_select %p41, %s42, %s43
    %p47 = pneg %p41
    %p48 = scmp.eq.s32.totalorder %s9, 3
    %p49 = por %p47, %p48
    %p50 = scmp.ne.s32.totalorder %s42, %s45
    %p51 = scmp.eq.s32.totalorder %s9, 0
    %p52 = por %p50, %p51
    %p53 = scmp.ne.s32.totalorder %s42, %s45
    %p54 = scmp.eq.s32.totalorder %s14, 3
    %p55 = por %p53, %p54
    %p56 = scmp.ne.s32.totalorder %s45, %s46
    %p57 = scmp.eq.s32.totalorder %s14, 0
    %p58 = por %p56, %p57
    %p59 = scmp.ne.s32.totalorder %s45, %s46
    %p60 = scmp.eq.s32.totalorder %s15, 3
    %p61 = por %p59, %p60
    %p63 = scmp.ne.s32.totalorder %s46, %s62
    %p64 = scmp.eq.s32.totalorder %s15, 0
    %p65 = por %p63, %p64
    %s67 = sadd.s32 %s66, 1
    %p70 = scmp.eq.s32.totalorder %s9, 3
    %p71 = scmp.ne.s32.totalorder %s66, %s68
    %p72 = scmp.eq.s32.totalorder %s9, 0
    %p73 = por %p71, %p72
    %p74 = scmp.ne.s32.totalorder %s66, %s68
    %p75 = scmp.eq.s32.totalorder %s14, 3
    %p76 = por %p74, %p75
    %p77 = scmp.ne.s32.totalorder %s68, %s69
    %p78 = scmp.eq.s32.totalorder %s14, 0
    %p79 = por %p77, %p78
    %p80 = scmp.ne.s32.totalorder %s68, %s69
    %p81 = scmp.eq.s32.totalorder %s15, 3
    %p82 = por %p80, %p81
    %p84 = scmp.ne.s32.totalorder %s69, %s83
    %p85 = scmp.eq.s32.totalorder %s15, 0
    %p86 = por %p84, %p85
    %s87 = ssub.s32 %s17, %s31
    %p88 = scmp.eq.s32.totalorder %s87, 0
    %s90 = sadd.s32 %s89, 1
    %s91 = scalar_select %p88, %s89, %s90
    %p94 = pneg %p88
    %p95 = scmp.eq.s32.totalorder %s9, 3
    %p96 = por %p94, %p95
    %p97 = scmp.ne.s32.totalorder %s89, %s92
    %p98 = scmp.eq.s32.totalorder %s9, 0
    %p99 = por %p97, %p98
    %p100 = scmp.ne.s32.totalorder %s89, %s92
    %p101 = scmp.eq.s32.totalorder %s14, 3
    %p102 = por %p100, %p101
    %p103 = scmp.ne.s32.totalorder %s92, %s93
    %p104 = scmp.eq.s32.totalorder %s14, 0
    %p105 = por %p103, %p104
    %p106 = scmp.ne.s32.totalorder %s92, %s93
    %p107 = scmp.eq.s32.totalorder %s15, 3
    %p108 = por %p106, %p107
    %p110 = scmp.ne.s32.totalorder %s93, %s109
    %p111 = scmp.eq.s32.totalorder %s15, 0
    %p112 = por %p110, %p111
    %s113 = ssub.s32 %s16, %s35
    %p114 = scmp.eq.s32.totalorder %s113, 0
    %s116 = sadd.s32 %s115, 1
    %s117 = scalar_select %p114, %s115, %s116
    %p120 = pneg %p114
    %p121 = scmp.eq.s32.totalorder %s9, 3
    %p122 = por %p120, %p121
    %p123 = scmp.ne.s32.totalorder %s115, %s118
    %p124 = scmp.eq.s32.totalorder %s9, 0
    %p125 = por %p123, %p124
    %p126 = scmp.ne.s32.totalorder %s115, %s118
    %p127 = scmp.eq.s32.totalorder %s14, 3
    %p128 = por %p126, %p127
    %p129 = scmp.ne.s32.totalorder %s118, %s119
    %p130 = scmp.eq.s32.totalorder %s14, 0
    %p131 = por %p129, %p130
    %p132 = scmp.ne.s32.totalorder %s118, %s119
    %p133 = scmp.eq.s32.totalorder %s15, 3
    %p134 = por %p132, %p133
    %p136 = scmp.ne.s32.totalorder %s119, %s135
    %p137 = scmp.eq.s32.totalorder %s15, 0
    %p138 = por %p136, %p137
    %p139 = scmp.le.s32.totalorder 1, %s9
    %p140 = scmp.lt.s32.totalorder %s9, 5
    %p141 = pnand %p139, %p140
    %p142 = pneg %p141
    // Predicated region
    $region9: #{rgcn_forward.1} parent=5 // pred_check
      _
    $region10: #{rgcn_forward.1} parent=5 // pred_check_branch
      %144 = sbr.rel (%p141) target = $region12
    $region11: #{rgcn_forward.1} parent=5 // pred_region
      %s145 = ssub.s32 %s9, 1
      // Predicated region
      $region13: #{rgcn_forward.1} parent=11 // pred_check
        %p146 = pneg %p79
      $region14: #{rgcn_forward.1} parent=11 // pred_check_branch
        %148 = sbr.rel (%p146) target = $region16
      $region15: #{rgcn_forward.1} parent=11 // pred_region
        _
      $region16: #{rgcn_forward.1} parent=11 // pred_fallthru
        _
    $region12: #{rgcn_forward.1} parent=5 // pred_fallthru
      _
    %p149 = scmp.lt.s32.totalorder %s9, 4
    // Predicated region
    $region17: #{rgcn_forward.1} parent=5 // pred_check
      %p150 = pneg %p149
    $region18: #{rgcn_forward.1} parent=5 // pred_check_branch
      %152 = sbr.rel (%p150) target = $region20
    $region19: #{rgcn_forward.1} parent=5 // pred_region
      // Predicated region
      $region21: #{rgcn_forward.1} parent=19 // pred_check
        %p153 = pneg %p52
      $region22: #{rgcn_forward.1} parent=19 // pred_check_branch
        %155 = sbr.rel (%p153) target = $region24
      $region23: #{rgcn_forward.1} parent=19 // pred_region
        %s156 = smul.u32 16, %s16
        %p157 = scmp.lt.s32.totalorder %s17, 3
        %s158 = scalar_select %p157, %s17, 3
        %p159 = scmp.lt.s32.totalorder %s156, 15
        %s160 = scalar_select %p159, %s156, 15
        %p161 = scmp.lt.s32.totalorder %s18, 0
        %s162 = scalar_select %p161, %s18, 0
        %s163 = sadd.s32 %s162, %s160
        %s164 = smul.addr %s158, 16
        %s165 = sadd.s32 %s163, %s164
        %s166 = smul.addr %s165, 4
        %s167 = scalar_lea.vmem %s0, %s166
        %s168 = smul.u32 16, %s16
      $region24: #{rgcn_forward.1} parent=19 // pred_fallthru
        _
      // Predicated region
      $region25: #{rgcn_forward.1} parent=19 // pred_check
        %p169 = pneg %p99
      $region26: #{rgcn_forward.1} parent=19 // pred_check_branch
        %171 = sbr.rel (%p169) target = $region28
      $region27: #{rgcn_forward.1} parent=19 // pred_region
        %p172 = scmp.lt.s32.totalorder %s17, 3
        %s173 = scalar_select %p172, %s17, 3
        %s174 = smul.addr %s173, 16
        %s175 = smul.addr %s174, 8
        %s176 = scalar_lea.vmem %s2, %s175
      $region28: #{rgcn_forward.1} parent=19 // pred_fallthru
        _
    $region20: #{rgcn_forward.1} parent=5 // pred_fallthru
      _
    %p177 = scmp.le.s32.totalorder 1, %s9
    %p178 = scmp.lt.s32.totalorder %s9, 5
    %p179 = pnand %p177, %p178
    %p180 = pneg %p179
    // Predicated region
    $region29: #{rgcn_forward.1} parent=5 // pred_check
      _
    $region30: #{rgcn_forward.1} parent=5 // pred_check_branch
      %182 = sbr.rel (%p179) target = $region32
    $region31: #{rgcn_forward.1} parent=5 // pred_region
      %s183 = ssub.s32 %s9, 1
      %s184 = smul.u32 16, %s19
      %p185 = scmp.lt.s32.totalorder %s20, 3
      %s186 = scalar_select %p185, %s20, 3
      %p187 = scmp.lt.s32.totalorder %s184, 15
      %s188 = scalar_select %p187, %s184, 15
      %p189 = scmp.lt.s32.totalorder %s21, 0
      %s190 = scalar_select %p189, %s21, 0
      %s191 = sadd.s32 %s190, %s188
      %s192 = smul.addr %s186, 16
      %s193 = sadd.s32 %s191, %s192
      %s194 = smul.addr %s193, 4
      %s195 = scalar_lea.vmem %s0, %s194
      %p196 = pneg %p58
      %p197 = pneg %p55
      %p198 = pneg %p79
      %p199 = pneg %p76
      %p200 = scmp.lt.s32.totalorder %s20, 3
      %s201 = scalar_select %p200, %s20, 3
      %s202 = smul.addr %s201, 16
      %s203 = smul.addr %s202, 8
      %s204 = scalar_lea.vmem %s2, %s203
      %p205 = pneg %p105
      %p206 = pneg %p102
      %p207 = pneg %p131
      %p208 = pneg %p128
      %s209 = smul.u32 16, %s19
      %p210 = scmp.lt.s32.totalorder %s209, 15
      %s211 = scalar_select %p210, %s209, 15
      %s212 = smul.addr %s211, 8
      %s213 = scalar_lea.vmem %s3, %s212
      %s214 = smul.u32 16, %s19
      %p215 = scmp.lt.s32.totalorder %s20, 3
      %s216 = scalar_select %p215, %s20, 3
      %p217 = scmp.lt.s32.totalorder %s214, 15
      %s218 = scalar_select %p217, %s214, 15
      %p219 = scmp.lt.s32.totalorder %s21, 0
      %s220 = scalar_select %p219, %s21, 0
      %s221 = sadd.s32 %s220, %s218
      %s222 = smul.addr %s216, 16
      %s223 = sadd.s32 %s221, %s222
      %s224 = smul.addr %s223, 4
      %s225 = scalar_lea.vmem %s0, %s224
      %s226 = smul.u32 16, %s19
      %p227 = scmp.lt.s32.totalorder %s20, 3
      %s228 = scalar_select %p227, %s20, 3
      %s229 = smul.addr %s228, 16
      %s230 = smul.addr %s229, 8
      %s231 = scalar_lea.vmem %s2, %s230
      %s232 = smul.u32 16, %s19
      %p233 = scmp.lt.s32.totalorder %s232, 15
      %s234 = scalar_select %p233, %s232, 15
      %s235 = smul.addr %s234, 8
      %s236 = scalar_lea.vmem %s3, %s235
      %s237 = smul.u32 16, %s19
      %p239 = scmp.eq.s32.totalorder %s20, 0
      %p240 = scmp.eq.s32.totalorder %s21, 0
      %p241 = pnand %p239, %p240
      %p242 = pneg %p241
      // Predicated region
      $region33: #{rgcn_forward.1} parent=31 // pred_check
        _
      $region34: #{rgcn_forward.1} parent=31 // pred_check_branch
        %244 = sbr.rel (%p241) target = $region36
      $region35: #{rgcn_forward.1} parent=31 // pred_region
        %245 = vst [vmem:[%s236] sm:$0xff] 0.0
        %246 = vst [vmem:[%s236 + $0x8] sm:$0xff] 0.0
        %247 = vst [vmem:[%s236 + $0x10] sm:$0xff] 0.0
        %248 = vst [vmem:[%s236 + $0x18] sm:$0xff] 0.0
        %249 = vst [vmem:[%s236 + $0x20] sm:$0xff] 0.0
        %250 = vst [vmem:[%s236 + $0x28] sm:$0xff] 0.0
        %251 = vst [vmem:[%s236 + $0x30] sm:$0xff] 0.0
        %252 = vst [vmem:[%s236 + $0x38] sm:$0xff] 0.0
        %253 = vst [vmem:[%s236 + $0x40] sm:$0xff] 0.0
        %254 = vst [vmem:[%s236 + $0x48] sm:$0xff] 0.0
        %255 = vst [vmem:[%s236 + $0x50] sm:$0xff] 0.0
        %256 = vst [vmem:[%s236 + $0x58] sm:$0xff] 0.0
        %257 = vst [vmem:[%s236 + $0x60] sm:$0xff] 0.0
        %258 = vst [vmem:[%s236 + $0x68] sm:$0xff] 0.0
        %259 = vst [vmem:[%s236 + $0x70] sm:$0xff] 0.0
        %260 = vst [vmem:[%s236 + $0x78] sm:$0xff] 0.0
      $region36: #{rgcn_forward.1} parent=31 // pred_fallthru
        _
      // Predicated region
      $region37: #{rgcn_forward.1} parent=31 // pred_check
        %p261 = pneg %p240
      $region38: #{rgcn_forward.1} parent=31 // pred_check_branch
        %263 = sbr.rel (%p261) target = $region40
      $region39: #{rgcn_forward.1} parent=31 // pred_region
        %264 = vst [vmem:[#allocation2] sm:$0xff] 0.0
        %265 = vst [vmem:[#allocation2 + $0x8] sm:$0xff] 0.0
        %266 = vst [vmem:[#allocation2 + $0x10] sm:$0xff] 0.0
        %267 = vst [vmem:[#allocation2 + $0x18] sm:$0xff] 0.0
        %268 = vst [vmem:[#allocation2 + $0x20] sm:$0xff] 0.0
        %269 = vst [vmem:[#allocation2 + $0x28] sm:$0xff] 0.0
        %270 = vst [vmem:[#allocation2 + $0x30] sm:$0xff] 0.0
        %271 = vst [vmem:[#allocation2 + $0x38] sm:$0xff] 0.0
        %272 = vst [vmem:[#allocation2 + $0x40] sm:$0xff] 0.0
        %273 = vst [vmem:[#allocation2 + $0x48] sm:$0xff] 0.0
        %274 = vst [vmem:[#allocation2 + $0x50] sm:$0xff] 0.0
        %275 = vst [vmem:[#allocation2 + $0x58] sm:$0xff] 0.0
        %276 = vst [vmem:[#allocation2 + $0x60] sm:$0xff] 0.0
        %277 = vst [vmem:[#allocation2 + $0x68] sm:$0xff] 0.0
        %278 = vst [vmem:[#allocation2 + $0x70] sm:$0xff] 0.0
        %279 = vst [vmem:[#allocation2 + $0x78] sm:$0xff] 0.0
      $region40: #{rgcn_forward.1} parent=31 // pred_fallthru
        _
      %s280 = smul.u32 %s21, 128
      %s281 = sshra.s32 %s280, 3
      %s282 = sand.u32 %s280, 7
      %s283 = smul.addr %s281, 4
      %s284 = scalar_lea.vmem %s1, %s283
      %v285 = vld [vmem:[%s284] sm:$0xf]
      %v286 = vld [vmem:[%s284 + $0x4] sm:$0xf]
      %v287 = vld [vmem:[%s284 + $0x8] sm:$0xf]
      %v288 = vld [vmem:[%s284 + $0xc] sm:$0xf]
      %v289 = vld [vmem:[%s284 + $0x10] sm:$0xf]
      %v290 = vld [vmem:[%s284 + $0x14] sm:$0xf]
      %v291 = vld [vmem:[%s284 + $0x18] sm:$0xf]
      %v292 = vld [vmem:[%s284 + $0x1c] sm:$0xf]
      %v293 = vld [vmem:[%s284 + $0x20] sm:$0xf]
      %v294 = vld [vmem:[%s284 + $0x24] sm:$0xf]
      %v295 = vld [vmem:[%s284 + $0x28] sm:$0xf]
      %v296 = vld [vmem:[%s284 + $0x2c] sm:$0xf]
      %v297 = vld [vmem:[%s284 + $0x30] sm:$0xf]
      %v298 = vld [vmem:[%s284 + $0x34] sm:$0xf]
      %v299 = vld [vmem:[%s284 + $0x38] sm:$0xf]
      %v300 = vld [vmem:[%s284 + $0x3c] sm:$0xf]
      %v301 = vld [vmem:[#allocation2] sm:$0xff]
      %v302 = vld [vmem:[#allocation2 + $0x8] sm:$0xff]
      %v303 = vld [vmem:[#allocation2 + $0x10] sm:$0xff]
      %v304 = vld [vmem:[#allocation2 + $0x18] sm:$0xff]
      %v305 = vld [vmem:[#allocation2 + $0x20] sm:$0xff]
      %v306 = vld [vmem:[#allocation2 + $0x28] sm:$0xff]
      %v307 = vld [vmem:[#allocation2 + $0x30] sm:$0xff]
      %v308 = vld [vmem:[#allocation2 + $0x38] sm:$0xff]
      %v309 = vld [vmem:[#allocation2 + $0x40] sm:$0xff]
      %v310 = vld [vmem:[#allocation2 + $0x48] sm:$0xff]
      %v311 = vld [vmem:[#allocation2 + $0x50] sm:$0xff]
      %v312 = vld [vmem:[#allocation2 + $0x58] sm:$0xff]
      %v313 = vld [vmem:[#allocation2 + $0x60] sm:$0xff]
      %v314 = vld [vmem:[#allocation2 + $0x68] sm:$0xff]
      %v315 = vld [vmem:[#allocation2 + $0x70] sm:$0xff]
      %v316 = vld [vmem:[#allocation2 + $0x78] sm:$0xff]
      %v317 = vld [vmem:[%s225] sm:$0xf]
      %v318 = vld [vmem:[%s225 + $0x4] sm:$0xf]
      %v319 = vld [vmem:[%s225 + $0x8] sm:$0xf]
      %v320 = vld [vmem:[%s225 + $0xc] sm:$0xf]
      %v321 = vld [vmem:[%s225 + $0x10] sm:$0xf]
      %v322 = vld [vmem:[%s225 + $0x14] sm:$0xf]
      %v323 = vld [vmem:[%s225 + $0x18] sm:$0xf]
      %v324 = vld [vmem:[%s225 + $0x1c] sm:$0xf]
      %v325 = vld [vmem:[%s225 + $0x20] sm:$0xf]
      %v326 = vld [vmem:[%s225 + $0x24] sm:$0xf]
      %v327 = vld [vmem:[%s225 + $0x28] sm:$0xf]
      %v328 = vld [vmem:[%s225 + $0x2c] sm:$0xf]
      %v329 = vld [vmem:[%s225 + $0x30] sm:$0xf]
      %v330 = vld [vmem:[%s225 + $0x34] sm:$0xf]
      %v331 = vld [vmem:[%s225 + $0x38] sm:$0xf]
      %v332 = vld [vmem:[%s225 + $0x3c] sm:$0xf]
      %v349 = vunpack.c.l.b16 %v317
      %v350 = vunpack.c.l.b16 %v318
      %v351 = vunpack.c.l.b16 %v319
      %v352 = vunpack.c.l.b16 %v320
      %v353 = vunpack.c.l.b16 %v321
      %v354 = vunpack.c.l.b16 %v322
      %v355 = vunpack.c.l.b16 %v323
      %v356 = vunpack.c.l.b16 %v324
      %v357 = vunpack.c.l.b16 %v325
      %v358 = vunpack.c.l.b16 %v326
      %v359 = vunpack.c.l.b16 %v327
      %v360 = vunpack.c.l.b16 %v328
      %v361 = vunpack.c.l.b16 %v329
      %v362 = vunpack.c.l.b16 %v330
      %v363 = vunpack.c.l.b16 %v331
      %v364 = vunpack.c.l.b16 %v332
      %v365 = vpack.c.b16 %v350, %v349
      %v366 = vpack.c.b16 %v352, %v351
      %v367 = vpack.c.b16 %v354, %v353
      %v368 = vpack.c.b16 %v356, %v355
      %v369 = vpack.c.b16 %v358, %v357
      %v370 = vpack.c.b16 %v360, %v359
      %v371 = vpack.c.b16 %v362, %v361
      %v372 = vpack.c.b16 %v364, %v363
      %v397 = vunpack.c.l.b16 %v285
      %v398 = vunpack.c.l.b16 %v286
      %v399 = vunpack.c.l.b16 %v287
      %v400 = vunpack.c.l.b16 %v288
      %v401 = vunpack.c.l.b16 %v289
      %v402 = vunpack.c.l.b16 %v290
      %v403 = vunpack.c.l.b16 %v291
      %v404 = vunpack.c.l.b16 %v292
      %v405 = vunpack.c.l.b16 %v293
      %v406 = vunpack.c.l.b16 %v294
      %v407 = vunpack.c.l.b16 %v295
      %v408 = vunpack.c.l.b16 %v296
      %v409 = vunpack.c.l.b16 %v297
      %v410 = vunpack.c.l.b16 %v298
      %v411 = vunpack.c.l.b16 %v299
      %v412 = vunpack.c.l.b16 %v300
      %v413 = vpack.c.b16 %v398, %v397
      %v414 = vpack.c.b16 %v400, %v399
      %v415 = vpack.c.b16 %v402, %v401
      %v416 = vpack.c.b16 %v404, %v403
      %v417 = vpack.c.b16 %v406, %v405
      %v418 = vpack.c.b16 %v408, %v407
      %v419 = vpack.c.b16 %v410, %v409
      %v420 = vpack.c.b16 %v412, %v411
      %429 = vmatprep.subr.bf16.mxu0 0
      %430 = vmatpush1.bf16.msra.mxu0 %v413
      %431 = vmatprep.subr.bf16.mxu0 0
      %432 = vmatpush1.bf16.msra.mxu0 %v414
      %433 = vmatprep.subr.bf16.mxu0 0
      %434 = vmatpush1.bf16.msra.mxu0 %v415
      %435 = vmatprep.subr.bf16.mxu0 0
      %436 = vmatpush1.bf16.msra.mxu0 %v416
      %437 = vmatprep.subr.bf16.mxu0 0
      %438 = vmatpush1.bf16.msra.mxu0 %v417
      %439 = vmatprep.subr.bf16.mxu0 0
      %440 = vmatpush1.bf16.msra.mxu0 %v418
      %441 = vmatprep.subr.bf16.mxu0 0
      %442 = vmatpush1.bf16.msra.mxu0 %v419
      %443 = vmatprep.subr.bf16.mxu0 0
      %444 = vmatpush1.bf16.msra.mxu0 %v420
      %445 = vmatprep.subr.bf16.mxu0 0
      %446 = vmatpush1.bf16.msra.mxu0 0
      %447 = vmatprep.subr.bf16.mxu0 0
      %448 = vmatpush1.bf16.msra.mxu0 0
      %449 = vmatprep.subr.bf16.mxu0 0
      %450 = vmatpush1.bf16.msra.mxu0 0
      %451 = vmatprep.subr.bf16.mxu0 0
      %452 = vmatpush1.bf16.msra.mxu0 0
      %453 = vmatprep.subr.bf16.mxu0 0
      %454 = vmatpush1.bf16.msra.mxu0 0
      %455 = vmatprep.subr.bf16.mxu0 0
      %456 = vmatpush1.bf16.msra.mxu0 0
      %457 = vmatprep.subr.bf16.mxu0 0
      %458 = vmatpush1.bf16.msra.mxu0 0
      %459 = vmatprep.subr.bf16.mxu0 0
      %460 = vmatpush1.bf16.msra.mxu0 0
      %461 = vmatprep.mubr.bf16.mxu0 0
      %462 = vmatmul.mubr.bf16.gmra.mrb[0].mxu0 %v365
      %v463 = vpop.f32.mrb[0].mxu0
      %v464 = vadd.f32 0.0, %v463
      %v465 = vpop.f32.mrb[0].mxu0
      %v466 = vpop.f32.mrb[0].mxu0
      %v467 = vadd.f32 0.0, %v466
      %v468 = vpop.f32.mrb[0].mxu0
      %469 = vmatprep.mubr.bf16.mxu0 0
      %470 = vmatmul.mubr.bf16.gmra.mrb[0].mxu0 %v366
      %v471 = vpop.f32.mrb[0].mxu0
      %v472 = vadd.f32 0.0, %v471
      %v473 = vpop.f32.mrb[0].mxu0
      %v474 = vpop.f32.mrb[0].mxu0
      %v475 = vadd.f32 0.0, %v474
      %v476 = vpop.f32.mrb[0].mxu0
      %477 = vmatprep.mubr.bf16.mxu0 0
      %478 = vmatmul.mubr.bf16.gmra.mrb[0].mxu0 %v367
      %v479 = vpop.f32.mrb[0].mxu0
      %v480 = vadd.f32 0.0, %v479
      %v481 = vpop.f32.mrb[0].mxu0
      %v482 = vpop.f32.mrb[0].mxu0
      %v483 = vadd.f32 0.0, %v482
      %v484 = vpop.f32.mrb[0].mxu0
      %485 = vmatprep.mubr.bf16.mxu0 0
      %486 = vmatmul.mubr.bf16.gmra.mrb[0].mxu0 %v368
      %v487 = vpop.f32.mrb[0].mxu0
      %v488 = vadd.f32 0.0, %v487
      %v489 = vpop.f32.mrb[0].mxu0
      %v490 = vpop.f32.mrb[0].mxu0
      %v491 = vadd.f32 0.0, %v490
      %v492 = vpop.f32.mrb[0].mxu0
      %493 = vmatprep.mubr.bf16.mxu0 0
      %494 = vmatmul.mubr.bf16.gmra.mrb[0].mxu0 %v369
      %v495 = vpop.f32.mrb[0].mxu0
      %v496 = vadd.f32 0.0, %v495
      %v497 = vpop.f32.mrb[0].mxu0
      %v498 = vpop.f32.mrb[0].mxu0
      %v499 = vadd.f32 0.0, %v498
      %v500 = vpop.f32.mrb[0].mxu0
      %501 = vmatprep.mubr.bf16.mxu0 0
      %502 = vmatmul.mubr.bf16.gmra.mrb[0].mxu0 %v370
      %v503 = vpop.f32.mrb[0].mxu0
      %v504 = vadd.f32 0.0, %v503
      %v505 = vpop.f32.mrb[0].mxu0
      %v506 = vpop.f32.mrb[0].mxu0
      %v507 = vadd.f32 0.0, %v506
      %v508 = vpop.f32.mrb[0].mxu0
      %509 = vmatprep.mubr.bf16.mxu0 0
      %510 = vmatmul.mubr.bf16.gmra.mrb[0].mxu0 %v371
      %v511 = vpop.f32.mrb[0].mxu0
      %v512 = vadd.f32 0.0, %v511
      %v513 = vpop.f32.mrb[0].mxu0
      %v514 = vpop.f32.mrb[0].mxu0
      %v515 = vadd.f32 0.0, %v514
      %v516 = vpop.f32.mrb[0].mxu0
      %517 = vmatprep.mubr.bf16.mxu0 0
      %518 = vmatmul.mubr.bf16.gmra.mrb[0].mxu0 %v372
      %v519 = vpop.f32.mrb[0].mxu0
      %v520 = vadd.f32 0.0, %v519
      %v521 = vpop.f32.mrb[0].mxu0
      %v522 = vpop.f32.mrb[0].mxu0
      %v523 = vadd.f32 0.0, %v522
      %v524 = vpop.f32.mrb[0].mxu0
      %525 = vdwg.mxu0
      %v526 = vadd.f32 %v301, %v464
      %v527 = vadd.f32 %v302, %v467
      %v528 = vadd.f32 %v303, %v472
      %v529 = vadd.f32 %v304, %v475
      %v530 = vadd.f32 %v305, %v480
      %v531 = vadd.f32 %v306, %v483
      %v532 = vadd.f32 %v307, %v488
      %v533 = vadd.f32 %v308, %v491
      %v534 = vadd.f32 %v309, %v496
      %v535 = vadd.f32 %v310, %v499
      %v536 = vadd.f32 %v311, %v504
      %v537 = vadd.f32 %v312, %v507
      %v538 = vadd.f32 %v313, %v512
      %v539 = vadd.f32 %v314, %v515
      %v540 = vadd.f32 %v315, %v520
      %v541 = vadd.f32 %v316, %v523
      %542 = vst [vmem:[#allocation2] sm:$0xff] %v526
      %543 = vst [vmem:[#allocation2 + $0x8] sm:$0xff] %v527
      %544 = vst [vmem:[#allocation2 + $0x10] sm:$0xff] %v528
      %545 = vst [vmem:[#allocation2 + $0x18] sm:$0xff] %v529
      %546 = vst [vmem:[#allocation2 + $0x20] sm:$0xff] %v530
      %547 = vst [vmem:[#allocation2 + $0x28] sm:$0xff] %v531
      %548 = vst [vmem:[#allocation2 + $0x30] sm:$0xff] %v532
      %549 = vst [vmem:[#allocation2 + $0x38] sm:$0xff] %v533
      %550 = vst [vmem:[#allocation2 + $0x40] sm:$0xff] %v534
      %551 = vst [vmem:[#allocation2 + $0x48] sm:$0xff] %v535
      %552 = vst [vmem:[#allocation2 + $0x50] sm:$0xff] %v536
      %553 = vst [vmem:[#allocation2 + $0x58] sm:$0xff] %v537
      %554 = vst [vmem:[#allocation2 + $0x60] sm:$0xff] %v538
      %555 = vst [vmem:[#allocation2 + $0x68] sm:$0xff] %v539
      %556 = vst [vmem:[#allocation2 + $0x70] sm:$0xff] %v540
      %557 = vst [vmem:[#allocation2 + $0x78] sm:$0xff] %v541
      // Predicated region
      $region41: #{rgcn_forward.1} parent=31 // pred_check
        %p558 = pneg %p240
      $region42: #{rgcn_forward.1} parent=31 // pred_check_branch
        %560 = sbr.rel (%p558) target = $region44
      $region43: #{rgcn_forward.1} parent=31 // pred_region
        %v561 = vld [vmem:[%s236] sm:$0xff]
        %v562 = vld [vmem:[%s236 + $0x8] sm:$0xff]
        %v563 = vld [vmem:[%s236 + $0x10] sm:$0xff]
        %v564 = vld [vmem:[%s236 + $0x18] sm:$0xff]
        %v565 = vld [vmem:[%s236 + $0x20] sm:$0xff]
        %v566 = vld [vmem:[%s236 + $0x28] sm:$0xff]
        %v567 = vld [vmem:[%s236 + $0x30] sm:$0xff]
        %v568 = vld [vmem:[%s236 + $0x38] sm:$0xff]
        %v569 = vld [vmem:[%s236 + $0x40] sm:$0xff]
        %v570 = vld [vmem:[%s236 + $0x48] sm:$0xff]
        %v571 = vld [vmem:[%s236 + $0x50] sm:$0xff]
        %v572 = vld [vmem:[%s236 + $0x58] sm:$0xff]
        %v573 = vld [vmem:[%s236 + $0x60] sm:$0xff]
        %v574 = vld [vmem:[%s236 + $0x68] sm:$0xff]
        %v575 = vld [vmem:[%s236 + $0x70] sm:$0xff]
        %v576 = vld [vmem:[%s236 + $0x78] sm:$0xff]
        %v577 = vld [vmem:[#allocation2] sm:$0xff]
        %v578 = vld [vmem:[#allocation2 + $0x8] sm:$0xff]
        %v579 = vld [vmem:[#allocation2 + $0x10] sm:$0xff]
        %v580 = vld [vmem:[#allocation2 + $0x18] sm:$0xff]
        %v581 = vld [vmem:[#allocation2 + $0x20] sm:$0xff]
        %v582 = vld [vmem:[#allocation2 + $0x28] sm:$0xff]
        %v583 = vld [vmem:[#allocation2 + $0x30] sm:$0xff]
        %v584 = vld [vmem:[#allocation2 + $0x38] sm:$0xff]
        %v585 = vld [vmem:[#allocation2 + $0x40] sm:$0xff]
        %v586 = vld [vmem:[#allocation2 + $0x48] sm:$0xff]
        %v587 = vld [vmem:[#allocation2 + $0x50] sm:$0xff]
        %v588 = vld [vmem:[#allocation2 + $0x58] sm:$0xff]
        %v589 = vld [vmem:[#allocation2 + $0x60] sm:$0xff]
        %v590 = vld [vmem:[#allocation2 + $0x68] sm:$0xff]
        %v591 = vld [vmem:[#allocation2 + $0x70] sm:$0xff]
        %v592 = vld [vmem:[#allocation2 + $0x78] sm:$0xff]
        %v593 = vld [vmem:[%s231] sm:$0xff]
        %v594 = vld [vmem:[%s231 + $0x8] sm:$0xff]
        %v595 = vld [vmem:[%s231 + $0x10] sm:$0xff]
        %v596 = vld [vmem:[%s231 + $0x18] sm:$0xff]
        %v597 = vld [vmem:[%s231 + $0x20] sm:$0xff]
        %v598 = vld [vmem:[%s231 + $0x28] sm:$0xff]
        %v599 = vld [vmem:[%s231 + $0x30] sm:$0xff]
        %v600 = vld [vmem:[%s231 + $0x38] sm:$0xff]
        %v601 = vld [vmem:[%s231 + $0x40] sm:$0xff]
        %v602 = vld [vmem:[%s231 + $0x48] sm:$0xff]
        %v603 = vld [vmem:[%s231 + $0x50] sm:$0xff]
        %v604 = vld [vmem:[%s231 + $0x58] sm:$0xff]
        %v605 = vld [vmem:[%s231 + $0x60] sm:$0xff]
        %v606 = vld [vmem:[%s231 + $0x68] sm:$0xff]
        %v607 = vld [vmem:[%s231 + $0x70] sm:$0xff]
        %v608 = vld [vmem:[%s231 + $0x78] sm:$0xff]
        %609 = vmatprep.subr.mxu0 0.0
        %610 = vmatpush1.msra.mxu0 %v593
        %611 = vmatprep.subr.mxu0 0.0
        %612 = vmatpush1.msra.mxu0 %v594
        %613 = vmatprep.subr.mxu0 0.0
        %614 = vmatpush1.msra.mxu0 %v595
        %615 = vmatprep.subr.mxu0 0.0
        %616 = vmatpush1.msra.mxu0 %v596
        %617 = vmatprep.subr.mxu0 0.0
        %618 = vmatpush1.msra.mxu0 %v597
        %619 = vmatprep.subr.mxu0 0.0
        %620 = vmatpush1.msra.mxu0 %v598
        %621 = vmatprep.subr.mxu0 0.0
        %622 = vmatpush1.msra.mxu0 %v599
        %623 = vmatprep.subr.mxu0 0.0
        %624 = vmatpush1.msra.mxu0 %v600
        %625 = vmatprep.subr.mxu0 0.0
        %626 = vmatpush1.msra.mxu0 %v601
        %627 = vmatprep.subr.mxu0 0.0
        %628 = vmatpush1.msra.mxu0 %v602
        %629 = vmatprep.subr.mxu0 0.0
        %630 = vmatpush1.msra.mxu0 %v603
        %631 = vmatprep.subr.mxu0 0.0
        %632 = vmatpush1.msra.mxu0 %v604
        %633 = vmatprep.subr.mxu0 0.0
        %634 = vmatpush1.msra.mxu0 %v605
        %635 = vmatprep.subr.mxu0 0.0
        %636 = vmatpush1.msra.mxu0 %v606
        %637 = vmatprep.subr.mxu0 0.0
        %638 = vmatpush1.msra.mxu0 %v607
        %639 = vmatprep.subr.mxu0 0.0
        %640 = vmatpush1.msra.mxu0 %v608
        %641 = vmatprep.subr.mxu0 0.0
        %642 = vmatpush1.msra.mxu0 0.0
        %643 = vmatprep.subr.mxu0 0.0
        %644 = vmatpush1.msra.mxu0 0.0
        %645 = vmatprep.subr.mxu0 0.0
        %646 = vmatpush1.msra.mxu0 0.0
        %647 = vmatprep.subr.mxu0 0.0
        %648 = vmatpush1.msra.mxu0 0.0
        %649 = vmatprep.subr.mxu0 0.0
        %650 = vmatpush1.msra.mxu0 0.0
        %651 = vmatprep.subr.mxu0 0.0
        %652 = vmatpush1.msra.mxu0 0.0
        %653 = vmatprep.subr.mxu0 0.0
        %654 = vmatpush1.msra.mxu0 0.0
        %655 = vmatprep.subr.mxu0 0.0
        %656 = vmatpush1.msra.mxu0 0.0
        %657 = vmatprep.subr.mxu0 0.0
        %658 = vmatpush1.msra.mxu0 0.0
        %659 = vmatprep.subr.mxu0 0.0
        %660 = vmatpush1.msra.mxu0 0.0
        %661 = vmatprep.subr.mxu0 0.0
        %662 = vmatpush1.msra.mxu0 0.0
        %663 = vmatprep.subr.mxu0 0.0
        %664 = vmatpush1.msra.mxu0 0.0
        %665 = vmatprep.subr.mxu0 0.0
        %666 = vmatpush1.msra.mxu0 0.0
        %667 = vmatprep.subr.mxu0 0.0
        %668 = vmatpush1.msra.mxu0 0.0
        %669 = vmatprep.subr.mxu0 0.0
        %670 = vmatpush1.msra.mxu0 0.0
        %671 = vmatprep.subr.mxu0 0.0
        %672 = vmatpush1.msra.mxu0 0.0
        %673 = vmatprep.mubr.f32.mxu0 0.0
        %674 = vmatmul.mubr.f32.gmra.mrb[0].mxu0 %v577
        %v675 = vpop.f32.mrb[0].mxu0
        %v676 = vadd.f32 0.0, %v675
        %v677 = vpop.f32.mrb[0].mxu0
        %678 = vmatprep.mubr.f32.mxu0 0.0
        %679 = vmatmul.mubr.f32.gmra.mrb[0].mxu0 %v578
        %v680 = vpop.f32.mrb[0].mxu0
        %v681 = vadd.f32 0.0, %v680
        %v682 = vpop.f32.mrb[0].mxu0
        %683 = vmatprep.mubr.f32.mxu0 0.0
        %684 = vmatmul.mubr.f32.gmra.mrb[0].mxu0 %v579
        %v685 = vpop.f32.mrb[0].mxu0
        %v686 = vadd.f32 0.0, %v685
        %v687 = vpop.f32.mrb[0].mxu0
        %688 = vmatprep.mubr.f32.mxu0 0.0
        %689 = vmatmul.mubr.f32.gmra.mrb[0].mxu0 %v580
        %v690 = vpop.f32.mrb[0].mxu0
        %v691 = vadd.f32 0.0, %v690
        %v692 = vpop.f32.mrb[0].mxu0
        %693 = vmatprep.mubr.f32.mxu0 0.0
        %694 = vmatmul.mubr.f32.gmra.mrb[0].mxu0 %v581
        %v695 = vpop.f32.mrb[0].mxu0
        %v696 = vadd.f32 0.0, %v695
        %v697 = vpop.f32.mrb[0].mxu0
        %698 = vmatprep.mubr.f32.mxu0 0.0
        %699 = vmatmul.mubr.f32.gmra.mrb[0].mxu0 %v582
        %v700 = vpop.f32.mrb[0].mxu0
        %v701 = vadd.f32 0.0, %v700
        %v702 = vpop.f32.mrb[0].mxu0
        %703 = vmatprep.mubr.f32.mxu0 0.0
        %704 = vmatmul.mubr.f32.gmra.mrb[0].mxu0 %v583
        %v705 = vpop.f32.mrb[0].mxu0
        %v706 = vadd.f32 0.0, %v705
        %v707 = vpop.f32.mrb[0].mxu0
        %708 = vmatprep.mubr.f32.mxu0 0.0
        %709 = vmatmul.mubr.f32.gmra.mrb[0].mxu0 %v584
        %v710 = vpop.f32.mrb[0].mxu0
        %v711 = vadd.f32 0.0, %v710
        %v712 = vpop.f32.mrb[0].mxu0
        %713 = vmatprep.mubr.f32.mxu0 0.0
        %714 = vmatmul.mubr.f32.gmra.mrb[0].mxu0 %v585
        %v715 = vpop.f32.mrb[0].mxu0
        %v716 = vadd.f32 0.0, %v715
        %v717 = vpop.f32.mrb[0].mxu0
        %718 = vmatprep.mubr.f32.mxu0 0.0
        %719 = vmatmul.mubr.f32.gmra.mrb[0].mxu0 %v586
        %v720 = vpop.f32.mrb[0].mxu0
        %v721 = vadd.f32 0.0, %v720
        %v722 = vpop.f32.mrb[0].mxu0
        %723 = vmatprep.mubr.f32.mxu0 0.0
        %724 = vmatmul.mubr.f32.gmra.mrb[0].mxu0 %v587
        %v725 = vpop.f32.mrb[0].mxu0
        %v726 = vadd.f32 0.0, %v725
        %v727 = vpop.f32.mrb[0].mxu0
        %728 = vmatprep.mubr.f32.mxu0 0.0
        %729 = vmatmul.mubr.f32.gmra.mrb[0].mxu0 %v588
        %v730 = vpop.f32.mrb[0].mxu0
        %v731 = vadd.f32 0.0, %v730
        %v732 = vpop.f32.mrb[0].mxu0
        %733 = vmatprep.mubr.f32.mxu0 0.0
        %734 = vmatmul.mubr.f32.gmra.mrb[0].mxu0 %v589
        %v735 = vpop.f32.mrb[0].mxu0
        %v736 = vadd.f32 0.0, %v735
        %v737 = vpop.f32.mrb[0].mxu0
        %738 = vmatprep.mubr.f32.mxu0 0.0
        %739 = vmatmul.mubr.f32.gmra.mrb[0].mxu0 %v590
        %v740 = vpop.f32.mrb[0].mxu0
        %v741 = vadd.f32 0.0, %v740
        %v742 = vpop.f32.mrb[0].mxu0
        %743 = vmatprep.mubr.f32.mxu0 0.0
        %744 = vmatmul.mubr.f32.gmra.mrb[0].mxu0 %v591
        %v745 = vpop.f32.mrb[0].mxu0
        %v746 = vadd.f32 0.0, %v745
        %v747 = vpop.f32.mrb[0].mxu0
        %748 = vmatprep.mubr.f32.mxu0 0.0
        %749 = vmatmul.mubr.f32.gmra.mrb[0].mxu0 %v592
        %v750 = vpop.f32.mrb[0].mxu0
        %v751 = vadd.f32 0.0, %v750
        %v752 = vpop.f32.mrb[0].mxu0
        %753 = vdwg.mxu0
        %v754 = vadd.f32 %v561, %v676
        %v755 = vadd.f32 %v562, %v681
        %v756 = vadd.f32 %v563, %v686
        %v757 = vadd.f32 %v564, %v691
        %v758 = vadd.f32 %v565, %v696
        %v759 = vadd.f32 %v566, %v701
        %v760 = vadd.f32 %v567, %v706
        %v761 = vadd.f32 %v568, %v711
        %v762 = vadd.f32 %v569, %v716
        %v763 = vadd.f32 %v570, %v721
        %v764 = vadd.f32 %v571, %v726
        %v765 = vadd.f32 %v572, %v731
        %v766 = vadd.f32 %v573, %v736
        %v767 = vadd.f32 %v574, %v741
        %v768 = vadd.f32 %v575, %v746
        %v769 = vadd.f32 %v576, %v751
        %770 = vst [vmem:[%s236] sm:$0xff] %v754
        %771 = vst [vmem:[%s236 + $0x8] sm:$0xff] %v755
        %772 = vst [vmem:[%s236 + $0x10] sm:$0xff] %v756
        %773 = vst [vmem:[%s236 + $0x18] sm:$0xff] %v757
        %774 = vst [vmem:[%s236 + $0x20] sm:$0xff] %v758
        %775 = vst [vmem:[%s236 + $0x28] sm:$0xff] %v759
        %776 = vst [vmem:[%s236 + $0x30] sm:$0xff] %v760
        %777 = vst [vmem:[%s236 + $0x38] sm:$0xff] %v761
        %778 = vst [vmem:[%s236 + $0x40] sm:$0xff] %v762
        %779 = vst [vmem:[%s236 + $0x48] sm:$0xff] %v763
        %780 = vst [vmem:[%s236 + $0x50] sm:$0xff] %v764
        %781 = vst [vmem:[%s236 + $0x58] sm:$0xff] %v765
        %782 = vst [vmem:[%s236 + $0x60] sm:$0xff] %v766
        %783 = vst [vmem:[%s236 + $0x68] sm:$0xff] %v767
        %784 = vst [vmem:[%s236 + $0x70] sm:$0xff] %v768
        %785 = vst [vmem:[%s236 + $0x78] sm:$0xff] %v769
      $region44: #{rgcn_forward.1} parent=31 // pred_fallthru
        _
      %s786 = smul.u32 16, %s19
      %p787 = scmp.lt.s32.totalorder %s786, 15
      %s788 = scalar_select %p787, %s786, 15
      %s789 = smul.addr %s788, 8
      %s790 = scalar_lea.vmem %s3, %s789
      // Predicated region
      $region45: #{rgcn_forward.1} parent=31 // pred_check
        %p791 = pneg %p128
      $region46: #{rgcn_forward.1} parent=31 // pred_check_branch
        %793 = sbr.rel (%p791) target = $region48
      $region47: #{rgcn_forward.1} parent=31 // pred_region
        %s794 = smul.u32 16, %s19
      $region48: #{rgcn_forward.1} parent=31 // pred_fallthru
        _
      // Predicated region
      $region49: #{rgcn_forward.1} parent=31 // pred_check
        %p795 = pneg %p128
      $region50: #{rgcn_forward.1} parent=31 // pred_check_branch
        %797 = sbr.rel (%p795) target = $region52
      $region51: #{rgcn_forward.1} parent=31 // pred_region
        %s798 = smul.u32 16, %s19
        %p799 = scmp.lt.s32.totalorder %s798, 15
        %s800 = scalar_select %p799, %s798, 15
        %s801 = smul.addr %s800, 8
        %s802 = scalar_lea.vmem %s3, %s801
      $region52: #{rgcn_forward.1} parent=31 // pred_fallthru
        _
    $region32: #{rgcn_forward.1} parent=5 // pred_fallthru
      _
    %p803 = scmp.le.s32.totalorder 2, %s9
    // Predicated region
    $region53: #{rgcn_forward.1} parent=5 // pred_check
      %p804 = pneg %p803
    $region54: #{rgcn_forward.1} parent=5 // pred_check_branch
      %806 = sbr.rel (%p804) target = $region56
    $region55: #{rgcn_forward.1} parent=5 // pred_region
      %s807 = ssub.s32 %s9, 2
    $region56: #{rgcn_forward.1} parent=5 // pred_fallthru
      _
  $region6: #{rgcn_forward.1} parent=0 // loop_footer
    %s13 = sadd.s32 1, %s9
  $region7: #{rgcn_forward.1} parent=0 // loop_footer_branch
    %8 = sbr.rel target = $region3
  $region8: #{rgcn_forward.1} parent=0 // loop_exit
    _

</llo_original>
